<compile_context>
chip_gen: v6e
topology: v6e:2x2x1
jax: 0.10.0
libtpu: 0.0.40
codegen_flags: <defaults>
</compile_context>

<pallas_src>
import functools

import jax
import jax.numpy as jnp
from jax.experimental import pallas as pl
from jax.experimental.pallas import tpu as pltpu

LANE = 128  # TPU lane width: label axis is padded to one full lane tile
TB = 16     # batch tile: multiple of 16 rows (bf16 sublane packing for MXU LHS)


def nli_head_kernel(h_ref, wp_ref, bp_ref, wh_ref, bh_ref, o_ref):
    # RoBERTa pooler: tanh(h_cls @ W_pool + b_pool).
    # bf16 MXU inputs, f32 accumulation; tanh goes to the EUP slot.
    pooled = jnp.tanh(
        jnp.dot(h_ref[...], wp_ref[...], preferred_element_type=jnp.float32)
        + bp_ref[...]
    )
    # nli_head on the lane-padded label tile: bf16 x bf16 MXU matmul, f32 acc.
    # Padded columns have zero weights and a -1e30 bias -> effectively -inf.
    logits = (
        jnp.dot(pooled.astype(jnp.bfloat16), wh_ref[...],
                preferred_element_type=jnp.float32)
        + bh_ref[...]
    )
    # Numerically stable log_softmax over the full 128-lane tile (f32 path).
    # Padded lanes contribute exp(-huge) == 0 to the sum and never win the max.
    m = jnp.max(logits, axis=-1, keepdims=True)
    shifted = logits - m
    lse = jnp.log(jnp.sum(jnp.exp(shifted), axis=-1, keepdims=True))
    o_ref[...] = shifted - lse


def prepare_nli_head_params(w_pool, b_pool, w_head, b_head):
    """One-time (model-load) weight preparation — hoisted out of the forward.

    w_pool: [V, V] (PyTorch Linear [out, in]), b_pool: [V],
    w_head: [L, V], b_head: [L].
    """
    V = w_pool.shape[1]
    L = w_head.shape[0]
    Lp = max(LANE, ((L + LANE - 1) // LANE) * LANE)

    wp_t = jnp.asarray(w_pool).T.astype(jnp.bfloat16)               # [V, V] bf16
    bp = jnp.asarray(b_pool).reshape(1, V).astype(jnp.float32)      # [1, V] f32
    # Label axis padded to a full lane tile; weights bf16, bias mask f32.
    wh_pad = jnp.zeros((V, Lp), jnp.bfloat16).at[:, :L].set(
        jnp.asarray(w_head).T.astype(jnp.bfloat16))                 # [V, Lp] bf16
    bh_pad = jnp.full((1, Lp), -1e30, jnp.float32).at[:, :L].set(
        jnp.asarray(b_head).reshape(1, L).astype(jnp.float32))      # [1, Lp] f32
    return {"wp_t": wp_t, "bp": bp, "wh_pad": wh_pad, "bh_pad": bh_pad, "L": L}


@functools.partial(jax.jit, static_argnames=("label_num",))
def _nli_head_forward(h_cls, wp_t, bp, wh_pad, bh_pad, *, label_num):
    B, V = h_cls.shape
    Lp = wh_pad.shape[1]
    Bp = ((B + TB - 1) // TB) * TB  # pad batch to a multiple of TB (16)

    h = jnp.zeros((Bp, V), jnp.bfloat16).at[:B, :].set(h_cls.astype(jnp.bfloat16))

    cost = pl.CostEstimate(
        flops=2 * Bp * V * V + 2 * Bp * V * Lp,
        transcendentals=Bp * V + Bp * Lp,
        bytes_accessed=(V * V * 2          # W_pool bf16
                        + V * Lp * 2       # W_head pad bf16
                        + Bp * V * 2       # h_cls bf16
                        + V * 4 + Lp * 4   # biases f32
                        + Bp * Lp * 4),    # output f32
    )

    out_padded = pl.pallas_call(
        nli_head_kernel,
        out_shape=jax.ShapeDtypeStruct((Bp, Lp), jnp.float32),
        grid=(Bp // TB,),
        in_specs=[
            pl.BlockSpec((TB, V), lambda i: (i, 0)),   # h_cls: tiled over batch
            pl.BlockSpec((V, V), lambda i: (0, 0)),    # W_pool: resident
            pl.BlockSpec((1, V), lambda i: (0, 0)),    # b_pool: resident
            pl.BlockSpec((V, Lp), lambda i: (0, 0)),   # W_head pad: resident
            pl.BlockSpec((1, Lp), lambda i: (0, 0)),   # b_head pad: resident
        ],
        out_specs=pl.BlockSpec((TB, Lp), lambda i: (i, 0)),  # lane-dense output
        compiler_params=pltpu.CompilerParams(
            dimension_semantics=("parallel",)),  # v7x megacore; no-op on v5e/v6e
        cost_estimate=cost,
    )(h, wp_t, bp, wh_pad, bh_pad)

    return out_padded[:B, :label_num]


def nli_head_forward(h_cls, params):
    return _nli_head_forward(
        h_cls, params["wp_t"], params["bp"], params["wh_pad"], params["bh_pad"],
        label_num=params["L"])


def reference(h_cls, w_pool, b_pool, w_head, b_head):
    # Match the kernel's precision: bf16 MXU inputs, f32 accumulation.
    h = h_cls.astype(jnp.bfloat16).astype(jnp.float32)
    wp = w_pool.T.astype(jnp.bfloat16).astype(jnp.float32)
    pooled = jnp.tanh(
        jnp.dot(h, wp, precision=jax.lax.Precision.HIGHEST)
        + b_pool.reshape(1, -1)
    )
    p = pooled.astype(jnp.bfloat16).astype(jnp.float32)
    wh = w_head.T.astype(jnp.bfloat16).astype(jnp.float32)
    logits = (
        jnp.dot(p, wh, precision=jax.lax.Precision.HIGHEST)
        + b_head.reshape(1, -1)
    )
    return jax.nn.log_softmax(logits, axis=1)


if __name__ == "__main__":
    # Small shapes consistent with the module's forward:
    #   batch = 8 sentence pairs, vdim = 128 (module uses 1024), label_num = 3.
    B, V, L = 8, 128, 3

    key = jax.random.PRNGKey(0)
    k_h, k_wp, k_bp, k_wh, k_bh = jax.random.split(key, 5)

    # CLS hidden states the encoder would produce.
    h_cls = jax.random.normal(k_h, (B, V), dtype=jnp.float32)

    # PyTorch Linear stores [out, in].
    w_pool = jax.random.normal(k_wp, (V, V), dtype=jnp.float32) * (1.0 / V**0.5)
    b_pool = jax.random.normal(k_bp, (V,), dtype=jnp.float32) * 0.02
    w_head = jax.random.normal(k_wh, (L, V), dtype=jnp.float32) * (1.0 / V**0.5)
    b_head = jax.random.normal(k_bh, (L,), dtype=jnp.float32) * 0.02

    # One-time weight prep (model load), hoisted out of the forward path.
    params = prepare_nli_head_params(w_pool, b_pool, w_head, b_head)

    log_probs = nli_head_forward(h_cls, params)
    log_probs = jax.block_until_ready(log_probs)

    ref = reference(h_cls, w_pool, b_pool, w_head, b_head)
    assert log_probs.shape == (B, L)
    assert jnp.allclose(log_probs, ref, atol=5e-3, rtol=5e-3), "mismatch vs reference"
    # log-probs must normalize: logsumexp over labels == 0
    assert jnp.allclose(
        jax.scipy.special.logsumexp(log_probs, axis=1),
        jnp.zeros((B,)),
        atol=1e-4,
    ), "log_softmax not normalized"

    print("KERNEL_OK")
</pallas_src>

<mosaic_0001>
module attributes {stable_mosaic.version = 11 : i64} {
  func.func @nli_head_kernel(%arg0: i32, %arg1: memref<16x128xbf16, #tpu.memory_space<vmem>>, %arg2: memref<128x128xbf16, #tpu.memory_space<vmem>>, %arg3: memref<1x128xf32, #tpu.memory_space<vmem>>, %arg4: memref<128x128xbf16, #tpu.memory_space<vmem>>, %arg5: memref<1x128xf32, #tpu.memory_space<vmem>>, %arg6: memref<16x128xf32, #tpu.memory_space<vmem>>) attributes {dimension_semantics = [#tpu.dimension_semantics<parallel>], iteration_bounds = array<i64: 1>, scalar_prefetch = 0 : i64, scratch_operands = 0 : i64, tpu.core_type = #tpu.core_type<tc>, window_params = [{transform_indices = @transform_0, window_bounds = array<i64: 16, 128>}, {pipeline_mode = #tpu.pipeline_mode<synchronous>, transform_indices = @transform_1, window_bounds = array<i64: 128, 128>}, {pipeline_mode = #tpu.pipeline_mode<synchronous>, transform_indices = @transform_2, window_bounds = array<i64: 1, 128>}, {pipeline_mode = #tpu.pipeline_mode<synchronous>, transform_indices = @transform_3, window_bounds = array<i64: 128, 128>}, {pipeline_mode = #tpu.pipeline_mode<synchronous>, transform_indices = @transform_4, window_bounds = array<i64: 1, 128>}, {transform_indices = @transform_5, window_bounds = array<i64: 16, 128>}]} {
    %c0 = arith.constant 0 : index
    %c0_0 = arith.constant 0 : index
    %0 = vector.load %arg1[%c0, %c0_0] : memref<16x128xbf16, #tpu.memory_space<vmem>>, vector<16x128xbf16>
    %c0_1 = arith.constant 0 : index
    %c0_2 = arith.constant 0 : index
    %1 = vector.load %arg2[%c0_1, %c0_2] : memref<128x128xbf16, #tpu.memory_space<vmem>>, vector<128x128xbf16>
    %cst = arith.constant dense<0.000000e+00> : vector<16x128xf32>
    %2 = tpu.matmul %0, %1, %cst {dimension_numbers = #tpu.dot_dimension_numbers<[1], [0], [0], [1], [0, 0, 1, 1], [], []>} : vector<16x128xbf16>, vector<128x128xbf16>, vector<16x128xf32> -> vector<16x128xf32>
    %c0_3 = arith.constant 0 : index
    %c0_4 = arith.constant 0 : index
    %3 = vector.load %arg3[%c0_3, %c0_4] : memref<1x128xf32, #tpu.memory_space<vmem>>, vector<1x128xf32>
    %4 = vector.broadcast %3 : vector<1x128xf32> to vector<16x128xf32>
    %5 = arith.addf %2, %4 : vector<16x128xf32>
    %6 = math.tanh %5 : vector<16x128xf32>
    %7 = arith.truncf %6 : vector<16x128xf32> to vector<16x128xbf16>
    %c0_5 = arith.constant 0 : index
    %c0_6 = arith.constant 0 : index
    %8 = vector.load %arg4[%c0_5, %c0_6] : memref<128x128xbf16, #tpu.memory_space<vmem>>, vector<128x128xbf16>
    %cst_7 = arith.constant dense<0.000000e+00> : vector<16x128xf32>
    %9 = tpu.matmul %7, %8, %cst_7 {dimension_numbers = #tpu.dot_dimension_numbers<[1], [0], [0], [1], [0, 0, 1, 1], [], []>} : vector<16x128xbf16>, vector<128x128xbf16>, vector<16x128xf32> -> vector<16x128xf32>
    %c0_8 = arith.constant 0 : index
    %c0_9 = arith.constant 0 : index
    %10 = vector.load %arg5[%c0_8, %c0_9] : memref<1x128xf32, #tpu.memory_space<vmem>>, vector<1x128xf32>
    %11 = vector.broadcast %10 : vector<1x128xf32> to vector<16x128xf32>
    %12 = arith.addf %9, %11 : vector<16x128xf32>
    %cst_10 = arith.constant dense<0xFF800000> : vector<16xf32>
    %13 = vector.multi_reduction <maximumf>, %12, %cst_10 [1] : vector<16x128xf32> to vector<16xf32>
    %14 = vector.shape_cast %13 : vector<16xf32> to vector<16x1xf32>
    %15 = vector.broadcast %14 : vector<16x1xf32> to vector<16x128xf32>
    %16 = arith.subf %12, %15 : vector<16x128xf32>
    %17 = math.exp %16 : vector<16x128xf32>
    %cst_11 = arith.constant dense<0.000000e+00> : vector<16xf32>
    %18 = vector.multi_reduction <add>, %17, %cst_11 [1] : vector<16x128xf32> to vector<16xf32>
    %19 = vector.shape_cast %18 : vector<16xf32> to vector<16x1xf32>
    %20 = math.log %19 : vector<16x1xf32>
    %21 = vector.broadcast %20 : vector<16x1xf32> to vector<16x128xf32>
    %22 = arith.subf %16, %21 : vector<16x128xf32>
    %c0_12 = arith.constant 0 : index
    %c0_13 = arith.constant 0 : index
    %23 = vector.load %arg6[%c0_12, %c0_13] : memref<16x128xf32, #tpu.memory_space<vmem>>, vector<16x128xf32>
    tpu.vector_store %arg6[%c0_12, %c0_13], %22 {strides = array<i32>} : memref<16x128xf32, #tpu.memory_space<vmem>>, vector<16x128xf32>,
    return
  }
  func.func @transform_0(%arg0: i32) -> (i32, i32) {
    %c0_i32 = arith.constant 0 : i32
    %c0_i32_0 = arith.constant 0 : i32
    return %arg0, %c0_i32 : i32, i32
  }
  func.func @transform_1(%arg0: i32) -> (i32, i32) {
    %c0_i32 = arith.constant 0 : i32
    %c0_i32_0 = arith.constant 0 : i32
    %c0_i32_1 = arith.constant 0 : i32
    return %c0_i32, %c0_i32_0 : i32, i32
  }
  func.func @transform_2(%arg0: i32) -> (i32, i32) {
    %c0_i32 = arith.constant 0 : i32
    %c0_i32_0 = arith.constant 0 : i32
    %c0_i32_1 = arith.constant 0 : i32
    return %c0_i32, %c0_i32_0 : i32, i32
  }
  func.func @transform_3(%arg0: i32) -> (i32, i32) {
    %c0_i32 = arith.constant 0 : i32
    %c0_i32_0 = arith.constant 0 : i32
    %c0_i32_1 = arith.constant 0 : i32
    return %c0_i32, %c0_i32_0 : i32, i32
  }
  func.func @transform_4(%arg0: i32) -> (i32, i32) {
    %c0_i32 = arith.constant 0 : i32
    %c0_i32_0 = arith.constant 0 : i32
    %c0_i32_1 = arith.constant 0 : i32
    return %c0_i32, %c0_i32_0 : i32, i32
  }
  func.func @transform_5(%arg0: i32) -> (i32, i32) {
    %c0_i32 = arith.constant 0 : i32
    %c0_i32_0 = arith.constant 0 : i32
    return %arg0, %c0_i32 : i32, i32
  }
}

</mosaic_0001>

<llo_original>
// kernel: _nli_head_forward.1
$region0: #{_nli_head_forward.1}
  #allocation0 [shape = 'u32[]', space=smem, size = 0x4, offset = 0x4, fixed_abs, tag = 'smem constant byte address 0x4 - core index']
  #allocation1 [shape = 'u32[144,128]{1,0:T(1,128)}', space=vmem, size = 0x12000, scoped, tag = 'internal scratch']
  %s0 = inlined_call_operand.vmem [shape: bf16[16,128], index: 0, kind: input, shape index: {}]
  %s1 = inlined_call_operand.hbm [shape: bf16[128,128], index: 1, kind: input, shape index: {}]
  %s2 = inlined_call_operand.vmem [shape: f32[1,128], index: 2, kind: input, shape index: {}]
  %s3 = inlined_call_operand.hbm [shape: bf16[128,128], index: 3, kind: input, shape index: {}]
  %s4 = inlined_call_operand.vmem [shape: f32[1,128], index: 4, kind: input, shape index: {}]
  %s5 = inlined_call_operand.vmem [shape: f32[16,128], index: 5, kind: output, shape index: {}]
  %s6 = sld [smem:[#allocation0]]
  $region38: #{_nli_head_forward.1} parent=0
    _
  %s8 = ssub.s32 1, %s6
  %s9 = scalar_select 0, %s8, %s6
  $region1: #{_nli_head_forward.1} parent=0
    #allocation2 [shape = 'u8[32768]{0}', space=vmem, size = 0x8000, scoped, tag = 'input window, operand 1, single buffered']
    #allocation3 [shape = 's32[1]{0}', space=sflag, size = 0x4, scoped, tag = 'scoped memory for _nli_head_forward.1']
    #allocation4 [shape = 'u8[32768]{0}', space=vmem, size = 0x8000, scoped, tag = 'input window, operand 3, single buffered']
    #allocation5 [shape = 's32[1]{0}', space=sflag, size = 0x4, scoped, tag = 'scoped memory for _nli_head_forward.1']
    %10 = vsyncpa [#allocation3], 0
    %11 = vsyncpa [#allocation5], 0
    // Predicated region
    $region2: #{_nli_head_forward.1} parent=1 // pred_check
      _
    $region3: #{_nli_head_forward.1} parent=1 // pred_check_branch
      %13 = sbr.rel (0) target = $region5
    $region4: #{_nli_head_forward.1} parent=1 // pred_region
      _
    $region5: #{_nli_head_forward.1} parent=1 // pred_fallthru
      _
    // Predicated region
    $region6: #{_nli_head_forward.1} parent=1 // pred_check
      _
    $region7: #{_nli_head_forward.1} parent=1 // pred_check_branch
      %15 = sbr.rel (0) target = $region9
    $region8: #{_nli_head_forward.1} parent=1 // pred_region
      %s17 = ssub.s32 1024, 1024
      %18 = vsyncadd [#allocation3], %s17
      %s19 = sshll.u32 [#allocation2], 4
      %s20 = int_to_ptr.vmem [resolvable:$true] %s19
      %25 = dma.hbm_to_vmem [thread:$0]  %s1, 1024, %s20, [#allocation3], 64, 64, 4
    $region9: #{_nli_head_forward.1} parent=1 // pred_fallthru
      _
    // Predicated region
    $region10: #{_nli_head_forward.1} parent=1 // pred_check
      _
    $region11: #{_nli_head_forward.1} parent=1 // pred_check_branch
      %27 = sbr.rel (0) target = $region13
    $region12: #{_nli_head_forward.1} parent=1 // pred_region
      _
    $region13: #{_nli_head_forward.1} parent=1 // pred_fallthru
      _
    // Predicated region
    $region14: #{_nli_head_forward.1} parent=1 // pred_check
      _
    $region15: #{_nli_head_forward.1} parent=1 // pred_check_branch
      %29 = sbr.rel (0) target = $region17
    $region16: #{_nli_head_forward.1} parent=1 // pred_region
      %s31 = ssub.s32 1024, 1024
      %32 = vsyncadd [#allocation5], %s31
      %s33 = sshll.u32 [#allocation4], 4
      %s34 = int_to_ptr.vmem [resolvable:$true] %s33
      %39 = dma.hbm_to_vmem [thread:$0]  %s3, 1024, %s34, [#allocation5], 64, 64, 4
    $region17: #{_nli_head_forward.1} parent=1 // pred_fallthru
      _
    // Predicated region
    $region18: #{_nli_head_forward.1} parent=1 // pred_check
      _
    $region19: #{_nli_head_forward.1} parent=1 // pred_check_branch
      %41 = sbr.rel (0) target = $region21
    $region20: #{_nli_head_forward.1} parent=1 // pred_region
      _
    $region21: #{_nli_head_forward.1} parent=1 // pred_fallthru
      _
    // Predicated region
    $region22: #{_nli_head_forward.1} parent=1 // pred_check
      _
    $region23: #{_nli_head_forward.1} parent=1 // pred_check_branch
      %43 = sbr.rel (0) target = $region25
    $region24: #{_nli_head_forward.1} parent=1 // pred_region
      %44 = dma.done [#allocation3], 1024
    $region25: #{_nli_head_forward.1} parent=1 // pred_fallthru
      _
    // Predicated region
    $region26: #{_nli_head_forward.1} parent=1 // pred_check
      _
    $region27: #{_nli_head_forward.1} parent=1 // pred_check_branch
      %46 = sbr.rel (0) target = $region29
    $region28: #{_nli_head_forward.1} parent=1 // pred_region
      %47 = dma.done [#allocation5], 1024
    $region29: #{_nli_head_forward.1} parent=1 // pred_fallthru
      _
    %v49 = vld [vmem:[%s0] sm:$0xf]
    %v50 = vld [vmem:[%s0 + $0x4] sm:$0xf]
    %v51 = vld [vmem:[#allocation2] sm:$0xf]
    %v52 = vld [vmem:[#allocation2 + $0x4] sm:$0xf]
    %v53 = vld [vmem:[#allocation2 + $0x8] sm:$0xf]
    %v54 = vld [vmem:[#allocation2 + $0xc] sm:$0xf]
    %v55 = vld [vmem:[#allocation2 + $0x10] sm:$0xf]
    %v56 = vld [vmem:[#allocation2 + $0x14] sm:$0xf]
    %v57 = vld [vmem:[#allocation2 + $0x18] sm:$0xf]
    %v58 = vld [vmem:[#allocation2 + $0x1c] sm:$0xf]
    %v59 = vld [vmem:[#allocation2 + $0x20] sm:$0xf]
    %v60 = vld [vmem:[#allocation2 + $0x24] sm:$0xf]
    %v61 = vld [vmem:[#allocation2 + $0x28] sm:$0xf]
    %v62 = vld [vmem:[#allocation2 + $0x2c] sm:$0xf]
    %v63 = vld [vmem:[#allocation2 + $0x30] sm:$0xf]
    %v64 = vld [vmem:[#allocation2 + $0x34] sm:$0xf]
    %v65 = vld [vmem:[#allocation2 + $0x38] sm:$0xf]
    %v66 = vld [vmem:[#allocation2 + $0x3c] sm:$0xf]
    %v67 = vld [vmem:[%s2] sm:$0x1]
    %v69 = vlaneseq
    %v70 = vshrl.u32 %v69, 7
    %v71 = vsub.s32 0, %v70
    %v72 = vrot.slane %v67, %v71
    %v76 = vunpack.c.l.b16 %v49
    %v77 = vunpack.c.l.b16 %v50
    %v78 = vpack.c.b16 %v77, %v76
    %v96 = vunpack.c.l.b16 %v51
    %v97 = vunpack.c.l.b16 %v52
    %v98 = vunpack.c.l.b16 %v53
    %v99 = vunpack.c.l.b16 %v54
    %v100 = vunpack.c.l.b16 %v55
    %v101 = vunpack.c.l.b16 %v56
    %v102 = vunpack.c.l.b16 %v57
    %v103 = vunpack.c.l.b16 %v58
    %v104 = vunpack.c.l.b16 %v59
    %v105 = vunpack.c.l.b16 %v60
    %v106 = vunpack.c.l.b16 %v61
    %v107 = vunpack.c.l.b16 %v62
    %v108 = vunpack.c.l.b16 %v63
    %v109 = vunpack.c.l.b16 %v64
    %v110 = vunpack.c.l.b16 %v65
    %v111 = vunpack.c.l.b16 %v66
    %v112 = vpack.c.b16 %v97, %v96
    %v113 = vpack.c.b16 %v99, %v98
    %v114 = vpack.c.b16 %v101, %v100
    %v115 = vpack.c.b16 %v103, %v102
    %v116 = vpack.c.b16 %v105, %v104
    %v117 = vpack.c.b16 %v107, %v106
    %v118 = vpack.c.b16 %v109, %v108
    %v119 = vpack.c.b16 %v111, %v110
    %128 = vmatprep.subr.bf16.mxu0 0
    %129 = vmatpush1.bf16.msra.mxu0 %v119
    %130 = vmatprep.subr.bf16.mxu0 0
    %131 = vmatpush1.bf16.msra.mxu0 %v118
    %132 = vmatprep.subr.bf16.mxu0 0
    %133 = vmatpush1.bf16.msra.mxu0 %v117
    %134 = vmatprep.subr.bf16.mxu0 0
    %135 = vmatpush1.bf16.msra.mxu0 %v116
    %136 = vmatprep.subr.bf16.mxu0 0
    %137 = vmatpush1.bf16.msra.mxu0 %v115
    %138 = vmatprep.subr.bf16.mxu0 0
    %139 = vmatpush1.bf16.msra.mxu0 %v114
    %140 = vmatprep.subr.bf16.mxu0 0
    %141 = vmatpush1.bf16.msra.mxu0 %v113
    %142 = vmatprep.subr.bf16.mxu0 0
    %143 = vmatpush1.bf16.msra.mxu0 %v112
    %144 = vmatprep.subr.bf16.mxu0 0
    %145 = vmatpush2.bf16.msra.mxu0 0
    %146 = vmatprep.subr.bf16.mxu0 0
    %147 = vmatpush2.bf16.msra.mxu0 0
    %148 = vmatprep.subr.bf16.mxu0 0
    %149 = vmatpush2.bf16.msra.mxu0 0
    %150 = vmatprep.subr.bf16.mxu0 0
    %151 = vmatpush2.bf16.msra.mxu0 0
    %152 = vmatprep.subr.bf16.mxu0 0
    %153 = vmatpush2.bf16.msra.mxu0 0
    %154 = vmatprep.subr.bf16.mxu0 0
    %155 = vmatpush2.bf16.msra.mxu0 0
    %156 = vmatprep.subr.bf16.mxu0 0
    %157 = vmatpush2.bf16.msra.mxu0 0
    %158 = vmatprep.subr.bf16.mxu0 0
    %159 = vmatpush2.bf16.msra.mxu0 0
    %160 = vmatprep.mubr.bf16.mxu0 0
    %161 = vmatmul.mubr.bf16.gmra.mxu0 %v78
    %v162 = vpop.f32.mrf.mxu0
    %v163 = vadd.f32 %v72, %v162
    %v164 = vpop.f32.mrf.mxu0
    %v165 = vpop.f32.mrf.mxu0
    %v166 = vadd.f32 %v72, %v165
    %v167 = vpop.f32.mrf.mxu0
    %168 = vdwg.mxu0
    %v169 = vtanh.pop %v163
    %v170 = vtanh.pop %v166
    %v171 = vpack.c.bf16 %v170, %v169
    %v172 = vld [vmem:[#allocation4] sm:$0xf]
    %v173 = vld [vmem:[#allocation4 + $0x4] sm:$0xf]
    %v174 = vld [vmem:[#allocation4 + $0x8] sm:$0xf]
    %v175 = vld [vmem:[#allocation4 + $0xc] sm:$0xf]
    %v176 = vld [vmem:[#allocation4 + $0x10] sm:$0xf]
    %v177 = vld [vmem:[#allocation4 + $0x14] sm:$0xf]
    %v178 = vld [vmem:[#allocation4 + $0x18] sm:$0xf]
    %v179 = vld [vmem:[#allocation4 + $0x1c] sm:$0xf]
    %v180 = vld [vmem:[#allocation4 + $0x20] sm:$0xf]
    %v181 = vld [vmem:[#allocation4 + $0x24] sm:$0xf]
    %v182 = vld [vmem:[#allocation4 + $0x28] sm:$0xf]
    %v183 = vld [vmem:[#allocation4 + $0x2c] sm:$0xf]
    %v184 = vld [vmem:[#allocation4 + $0x30] sm:$0xf]
    %v185 = vld [vmem:[#allocation4 + $0x34] sm:$0xf]
    %v186 = vld [vmem:[#allocation4 + $0x38] sm:$0xf]
    %v187 = vld [vmem:[#allocation4 + $0x3c] sm:$0xf]
    %v188 = vld [vmem:[%s4] sm:$0x1]
    %v190 = vlaneseq
    %v191 = vshrl.u32 %v190, 7
    %v192 = vsub.s32 0, %v191
    %v193 = vrot.slane %v188, %v192
    %v211 = vunpack.c.l.b16 %v172
    %v212 = vunpack.c.l.b16 %v173
    %v213 = vunpack.c.l.b16 %v174
    %v214 = vunpack.c.l.b16 %v175
    %v215 = vunpack.c.l.b16 %v176
    %v216 = vunpack.c.l.b16 %v177
    %v217 = vunpack.c.l.b16 %v178
    %v218 = vunpack.c.l.b16 %v179
    %v219 = vunpack.c.l.b16 %v180
    %v220 = vunpack.c.l.b16 %v181
    %v221 = vunpack.c.l.b16 %v182
    %v222 = vunpack.c.l.b16 %v183
    %v223 = vunpack.c.l.b16 %v184
    %v224 = vunpack.c.l.b16 %v185
    %v225 = vunpack.c.l.b16 %v186
    %v226 = vunpack.c.l.b16 %v187
    %v227 = vpack.c.b16 %v212, %v211
    %v228 = vpack.c.b16 %v214, %v213
    %v229 = vpack.c.b16 %v216, %v215
    %v230 = vpack.c.b16 %v218, %v217
    %v231 = vpack.c.b16 %v220, %v219
    %v232 = vpack.c.b16 %v222, %v221
    %v233 = vpack.c.b16 %v224, %v223
    %v234 = vpack.c.b16 %v226, %v225
    %243 = vmatprep.subr.bf16.mxu0 0
    %244 = vmatpush1.bf16.msra.mxu0 %v234
    %245 = vmatprep.subr.bf16.mxu0 0
    %246 = vmatpush1.bf16.msra.mxu0 %v233
    %247 = vmatprep.subr.bf16.mxu0 0
    %248 = vmatpush1.bf16.msra.mxu0 %v232
    %249 = vmatprep.subr.bf16.mxu0 0
    %250 = vmatpush1.bf16.msra.mxu0 %v231
    %251 = vmatprep.subr.bf16.mxu0 0
    %252 = vmatpush1.bf16.msra.mxu0 %v230
    %253 = vmatprep.subr.bf16.mxu0 0
    %254 = vmatpush1.bf16.msra.mxu0 %v229
    %255 = vmatprep.subr.bf16.mxu0 0
    %256 = vmatpush1.bf16.msra.mxu0 %v228
    %257 = vmatprep.subr.bf16.mxu0 0
    %258 = vmatpush1.bf16.msra.mxu0 %v227
    %259 = vmatprep.subr.bf16.mxu0 0
    %260 = vmatpush2.bf16.msra.mxu0 0
    %261 = vmatprep.subr.bf16.mxu0 0
    %262 = vmatpush2.bf16.msra.mxu0 0
    %263 = vmatprep.subr.bf16.mxu0 0
    %264 = vmatpush2.bf16.msra.mxu0 0
    %265 = vmatprep.subr.bf16.mxu0 0
    %266 = vmatpush2.bf16.msra.mxu0 0
    %267 = vmatprep.subr.bf16.mxu0 0
    %268 = vmatpush2.bf16.msra.mxu0 0
    %269 = vmatprep.subr.bf16.mxu0 0
    %270 = vmatpush2.bf16.msra.mxu0 0
    %271 = vmatprep.subr.bf16.mxu0 0
    %272 = vmatpush2.bf16.msra.mxu0 0
    %273 = vmatprep.subr.bf16.mxu0 0
    %274 = vmatpush2.bf16.msra.mxu0 0
    %275 = vmatprep.mubr.bf16.mxu0 0
    %276 = vmatmul.mubr.bf16.gmra.mxu0 %v171
    %v277 = vpop.f32.mrf.mxu0
    %v278 = vadd.f32 %v193, %v277
    %v279 = vpop.f32.mrf.mxu0
    %v280 = vpop.f32.mrf.mxu0
    %v281 = vadd.f32 %v193, %v280
    %v282 = vpop.f32.mrf.mxu0
    %283 = vdwg.mxu0
    %284 = vmax.xlane.f32.xlu0 %v278
    %v285 = vpop.xlane.xlu0 %284
    %286 = vmax.xlane.f32.xlu0 %v281
    %v287 = vpop.xlane.xlu0 %286
    %v288 = vsub.f32 %v278, %v285
    %v289 = vsub.f32 %v281, %v287
    %v290 = vmul.f32 %v288, 1.442695
    %v291 = vpow.pop %v290
    %v292 = vmul.f32 %v289, 1.442695
    %v293 = vpow.pop %v292
    %294 = vadd.xlane.f32.xlu0 %v291
    %v295 = vpop.xlane.xlu0 %294
    %296 = vadd.xlane.f32.xlu0 %v293
    %v297 = vpop.xlane.xlu0 %296
    %v298 = vlog2.pop %v295
    %v299 = vmul.f32 %v298, 0.6931472
    %v300 = vlog2.pop %v297
    %v301 = vmul.f32 %v300, 0.6931472
    %v302 = vsub.f32 %v288, %v299
    %v303 = vsub.f32 %v289, %v301
    %304 = vst [vmem:[%s5] sm:$0xff] %v302
    %305 = vst [vmem:[%s5 + $0x8] sm:$0xff] %v303
    // Predicated region
    $region30: #{_nli_head_forward.1} parent=1 // pred_check
      _
    $region31: #{_nli_head_forward.1} parent=1 // pred_check_branch
      %307 = sbr.rel (0) target = $region33
    $region32: #{_nli_head_forward.1} parent=1 // pred_region
      _
    $region33: #{_nli_head_forward.1} parent=1 // pred_fallthru
      _
    // Predicated region
    $region34: #{_nli_head_forward.1} parent=1 // pred_check
      _
    $region35: #{_nli_head_forward.1} parent=1 // pred_check_branch
      %309 = sbr.rel (0) target = $region37
    $region36: #{_nli_head_forward.1} parent=1 // pred_region
      _
    $region37: #{_nli_head_forward.1} parent=1 // pred_fallthru
      _
    %310 = vsyncpa [#allocation3], 1
    %311 = vsyncpa [#allocation5], 1

</llo_original>
